<compile_context>
chip_gen: v7x
topology: tpu7x:2x2x1
jax: 0.10.0
libtpu: 0.0.40
codegen_flags: <defaults>
</compile_context>

<pallas_src>
import functools

import numpy as np

import jax
import jax.numpy as jnp
from jax.experimental import pallas as pl
from jax.experimental.pallas import tpu as pltpu


# ------------------------------ fused kernel ---------------------------------
def _vgg_block_kernel(*refs, num_convs, H, W, K, pad):
    x_ref = refs[0]
    w_refs = refs[1:1 + num_convs]
    cmask_ref, pmask_ref, sel_ref, o_ref = refs[1 + num_convs:]

    HW = H * W
    cmask = cmask_ref[...]            # (K*K, HW)      {0,1} conv border masks
    pmask = pmask_ref[...]            # (2*(K-1), HW)  additive {0,-1e30} pool masks

    def rotate_left(a2, a, s, rows):
        # a2 = [a | a] along lanes; returns r with r[:, p] = a[:, (p + s) % HW].
        if s == 0:
            return a
        return jax.lax.slice(a2, (0, s), (rows, s + HW))

    def same_conv(act, w_ref):
        # act: (C_l, HW) activation in compute dtype on the flat lane grid.
        # w_ref: (C_next, C_l*K*K + 1) merged weights (+ bias column).
        rows = act.shape[0]
        a2 = jnp.concatenate([act, act], axis=1)   # aligned lane concat
        pieces = []
        for ky in range(K):
            for kx in range(K):
                dy, dx = ky - pad, kx - pad
                shifted = rotate_left(a2, act, (dy * W + dx) % HW, rows)
                if dy == 0 and dx == 0:
                    pieces.append(shifted)                 # center tap: mask == 1
                else:
                    t = ky * K + kx
                    pieces.append(shifted * cmask[t:t + 1, :])
        pieces.append(jnp.ones((1, HW), act.dtype))        # bias row
        patches = jnp.concatenate(pieces, axis=0)          # (C_l*K*K + 1, HW)
        return jnp.dot(w_ref[...], patches,
                       preferred_element_type=jnp.float32)  # (C_next, HW) f32

    # ---- chained "same" convolutions; activation stays in VMEM/registers ----
    act = x_ref[0]                                          # (C_in_p, HW) compute dtype
    y = None
    for li in range(num_convs):
        y = same_conv(act, w_refs[li])                      # f32
        if li + 1 < num_convs:
            act = y.astype(x_ref.dtype)                     # compute dtype for next conv

    # ---- MaxPool2d(K, stride=K, ceil_mode=True) on the f32 conv output ------
    rows = y.shape[0]

    y2 = jnp.concatenate([y, y], axis=1)
    colmax = y                                              # max over window cols
    for dx in range(1, K):
        cand = rotate_left(y2, y, dx, rows)
        colmax = jnp.maximum(colmax, cand + pmask[dx - 1:dx, :])

    c2 = jnp.concatenate([colmax, colmax], axis=1)
    winmax = colmax                                         # max over window rows
    for dy in range(1, K):
        cand = rotate_left(c2, colmax, dy * W, rows)
        winmax = jnp.maximum(winmax, cand + pmask[K - 2 + dy:K - 1 + dy, :])

    # gather the stride-K window origins with a 0/1 selection matmul (MXU)
    pooled = jnp.dot(winmax, sel_ref[...], preferred_element_type=jnp.float32)
    o_ref[0] = pooled.astype(o_ref.dtype)                   # (C_out_p, Ho*Wo)


# --------------------------- wrapper-side helpers -----------------------------
def _round_up(v, m):
    return (v + m - 1) // m * m


def _tap_border_masks(H, W, K, pad, dtype):
    ys = np.arange(H * W) // W
    xs = np.arange(H * W) % W
    rows = []
    for ky in range(K):
        for kx in range(K):
            dy, dx = ky - pad, kx - pad
            rows.append((ys + dy >= 0) & (ys + dy < H)
                        & (xs + dx >= 0) & (xs + dx < W))
    return jnp.asarray(np.stack(rows).astype(np.float32)).astype(dtype)  # (K*K, H*W)


def _pool_masks_additive(H, W, K):
    ys = np.arange(H * W) // W
    xs = np.arange(H * W) % W
    rows = [(xs + d < W) for d in range(1, K)] + [(ys + d < H) for d in range(1, K)]
    valid = np.stack(rows)
    return jnp.asarray(np.where(valid, 0.0, -1e30).astype(np.float32))   # (2*(K-1), H*W)


def _pool_select_matrix(H, W, K):
    Ho, Wo = -(-H // K), -(-W // K)
    sel = np.zeros((H * W, Ho * Wo), np.float32)
    for yo in range(Ho):
        for xo in range(Wo):
            sel[(K * yo) * W + K * xo, yo * Wo + xo] = 1.0
    return jnp.asarray(sel)                                              # (H*W, Ho*Wo)


def _augment_weights(w, b, c_in_p, c_out_p, compute_dtype):
    C_out, C_in, K, _ = w.shape
    w = jnp.pad(w, ((0, c_out_p - C_out), (0, c_in_p - C_in), (0, 0), (0, 0)))
    b = jnp.pad(b, (0, c_out_p - C_out))
    wm = jnp.transpose(w, (0, 2, 3, 1)).reshape(c_out_p, K * K * c_in_p)
    return jnp.concatenate([wm, b[:, None]], axis=1).astype(compute_dtype)


# ------------------------------- VGGBlock -------------------------------------
def vgg_block_forward(x, conv_params, kernel_size, padding,
                      compute_dtype=jnp.float32):
    """Fused Conv2d x num_convs -> MaxPool2d(K, ceil_mode=True) on NCHW input."""
    N, C_in, H, W = x.shape
    K = kernel_size
    C_out = conv_params[0][0].shape[0]
    # TODO(synk): only 'same' convolutions (2*padding == kernel_size-1) and
    # dim=2 are implemented by the fused shift+mask formulation.
    assert 2 * padding == K - 1, "fused kernel requires 'same' convolutions"

    HW = H * W
    Ho, Wo = -(-H // K), -(-W // K)
    P_out = Ho * Wo

    c_in_p = _round_up(C_in, 8)
    c_out_p = _round_up(C_out, 8)

    x_flat = x.reshape(N, C_in, HW)
    if c_in_p != C_in:
        x_flat = jnp.pad(x_flat, ((0, 0), (0, c_in_p - C_in), (0, 0)))
    x_flat = x_flat.astype(compute_dtype)

    w_augs = []
    cin = c_in_p
    for (w, b) in conv_params:
        w_augs.append(_augment_weights(w, b, cin, c_out_p, compute_dtype))
        cin = c_out_p

    cmask = _tap_border_masks(H, W, K, padding, compute_dtype)
    pmask = _pool_masks_additive(H, W, K)
    sel = _pool_select_matrix(H, W, K)

    num_convs = len(conv_params)
    kernel = functools.partial(
        _vgg_block_kernel, num_convs=num_convs, H=H, W=W, K=K, pad=padding)

    in_specs = [pl.BlockSpec((1, c_in_p, HW), lambda n: (n, 0, 0))]
    for wa in w_augs:
        in_specs.append(pl.BlockSpec(wa.shape, lambda n: (0, 0)))
    in_specs += [
        pl.BlockSpec(cmask.shape, lambda n: (0, 0)),
        pl.BlockSpec(pmask.shape, lambda n: (0, 0)),
        pl.BlockSpec(sel.shape, lambda n: (0, 0)),
    ]

    out = pl.pallas_call(
        kernel,
        out_shape=jax.ShapeDtypeStruct((N, c_out_p, P_out), x.dtype),
        grid=(N,),
        in_specs=in_specs,
        out_specs=pl.BlockSpec((1, c_out_p, P_out), lambda n: (n, 0, 0)),
        compiler_params=pltpu.CompilerParams(
            dimension_semantics=("parallel",),
            vmem_limit_bytes=32 * 1024 * 1024,
        ),
    )(x_flat, *w_augs, cmask, pmask, sel)

    return out[:, :C_out, :].reshape(N, C_out, Ho, Wo)


def init_vgg_block_params(key, num_convs, in_channels, out_channels, kernel_size):
    params = []
    c_in = in_channels
    for _ in range(num_convs):
        key, kw, kb = jax.random.split(key, 3)
        fan_in = c_in * kernel_size * kernel_size
        bound = 1.0 / jnp.sqrt(fan_in)
        w = jax.random.uniform(
            kw, (out_channels, c_in, kernel_size, kernel_size),
            minval=-bound, maxval=bound, dtype=jnp.float32,
        )
        b = jax.random.uniform(
            kb, (out_channels,), minval=-bound, maxval=bound, dtype=jnp.float32
        )
        params.append((w, b))
        c_in = out_channels
    return params


# ------------------------------- reference ------------------------------------
def _reference(x, conv_params, kernel_size, padding):
    y = x
    for w, b in conv_params:
        y = jax.lax.conv_general_dilated(
            y, w, (1, 1), [(padding, padding), (padding, padding)],
            dimension_numbers=("NCHW", "OIHW", "NCHW"),
        ) + b[None, :, None, None]
    N, C, H, W = y.shape
    K = kernel_size
    Ho, Wo = -(-H // K), -(-W // K)
    return jax.lax.reduce_window(
        y, -jnp.inf, jax.lax.max,
        window_dimensions=(1, 1, K, K), window_strides=(1, 1, K, K),
        padding=[(0, 0), (0, 0), (0, Ho * K - H), (0, Wo * K - W)],
    )


if __name__ == "__main__":
    # VGGBlock(dim=2, num_convs=2, in_channels=4, out_channels=8,
    #          kernel_size=3, padding=1)
    num_convs, in_ch, out_ch, ksize, pad = 2, 4, 8, 3, 1
    key = jax.random.PRNGKey(0)
    key, kx = jax.random.split(key)
    x = jax.random.normal(kx, (2, in_ch, 16, 16), dtype=jnp.float32)

    params = init_vgg_block_params(key, num_convs, in_ch, out_ch, ksize)
    ref = _reference(x, params, ksize, pad)

    # f32 path (tight check)
    out_f32 = jax.block_until_ready(vgg_block_forward(x, params, ksize, pad))
    assert out_f32.shape == ref.shape == (2, out_ch, 6, 6), out_f32.shape
    assert jnp.allclose(out_f32, ref, atol=1e-4, rtol=1e-4), "f32 mismatch"

    # bf16 MXU path for v6e/v7x (loose check vs f32 reference)
    out_bf16 = jax.block_until_ready(
        vgg_block_forward(x, params, ksize, pad, compute_dtype=jnp.bfloat16))
    assert jnp.allclose(out_bf16, ref, atol=5e-2, rtol=5e-2), "bf16 mismatch"

    print("KERNEL_OK")
</pallas_src>

<mosaic_0001>
module attributes {stable_mosaic.version = 11 : i64} {
  func.func @_vgg_block_kernel(%arg0: i32, %arg1: memref<1x8x256xf32, #tpu.memory_space<vmem>>, %arg2: memref<8x73xf32, #tpu.memory_space<vmem>>, %arg3: memref<8x73xf32, #tpu.memory_space<vmem>>, %arg4: memref<9x256xf32, #tpu.memory_space<vmem>>, %arg5: memref<4x256xf32, #tpu.memory_space<vmem>>, %arg6: memref<256x36xf32, #tpu.memory_space<vmem>>, %arg7: memref<1x8x36xf32, #tpu.memory_space<vmem>>) attributes {dimension_semantics = [#tpu.dimension_semantics<parallel>], iteration_bounds = array<i64: 2>, scalar_prefetch = 0 : i64, scratch_operands = 0 : i64, tpu.core_type = #tpu.core_type<tc>, window_params = [{transform_indices = @transform_0, window_bounds = array<i64: 1, 8, 256>}, {pipeline_mode = #tpu.pipeline_mode<synchronous>, transform_indices = @transform_1, window_bounds = array<i64: 8, 73>}, {pipeline_mode = #tpu.pipeline_mode<synchronous>, transform_indices = @transform_2, window_bounds = array<i64: 8, 73>}, {pipeline_mode = #tpu.pipeline_mode<synchronous>, transform_indices = @transform_3, window_bounds = array<i64: 9, 256>}, {pipeline_mode = #tpu.pipeline_mode<synchronous>, transform_indices = @transform_4, window_bounds = array<i64: 4, 256>}, {pipeline_mode = #tpu.pipeline_mode<synchronous>, transform_indices = @transform_5, window_bounds = array<i64: 256, 36>}, {transform_indices = @transform_6, window_bounds = array<i64: 1, 8, 36>}]} {
    %c0 = arith.constant 0 : index
    %c0_0 = arith.constant 0 : index
    %0 = vector.load %arg4[%c0, %c0_0] : memref<9x256xf32, #tpu.memory_space<vmem>>, vector<9x256xf32>
    %c0_1 = arith.constant 0 : index
    %c0_2 = arith.constant 0 : index
    %1 = vector.load %arg5[%c0_1, %c0_2] : memref<4x256xf32, #tpu.memory_space<vmem>>, vector<4x256xf32>
    %c0_3 = arith.constant 0 : index
    %c0_4 = arith.constant 0 : index
    %c0_5 = arith.constant 0 : index
    %2 = vector.load %arg1[%c0_3, %c0_4, %c0_5] : memref<1x8x256xf32, #tpu.memory_space<vmem>>, vector<1x8x256xf32>
    %3 = vector.shape_cast %2 : vector<1x8x256xf32> to vector<8x256xf32>
    %4 = tpu.concatenate %3, %3 in 1 : vector<8x256xf32>, vector<8x256xf32> -> vector<8x512xf32>
    %5 = vector.extract_strided_slice %4 {offsets = [0, 239], sizes = [8, 256], strides = [1, 1]} : vector<8x512xf32> to vector<8x256xf32>
    %6 = vector.extract_strided_slice %0 {offsets = [0, 0], sizes = [1, 256], strides = [1, 1]} : vector<9x256xf32> to vector<1x256xf32>
    %7 = vector.broadcast %6 : vector<1x256xf32> to vector<8x256xf32>
    %8 = arith.mulf %5, %7 : vector<8x256xf32>
    %9 = vector.extract_strided_slice %4 {offsets = [0, 240], sizes = [8, 256], strides = [1, 1]} : vector<8x512xf32> to vector<8x256xf32>
    %10 = vector.extract_strided_slice %0 {offsets = [1, 0], sizes = [1, 256], strides = [1, 1]} : vector<9x256xf32> to vector<1x256xf32>
    %11 = vector.broadcast %10 : vector<1x256xf32> to vector<8x256xf32>
    %12 = arith.mulf %9, %11 : vector<8x256xf32>
    %13 = vector.extract_strided_slice %4 {offsets = [0, 241], sizes = [8, 256], strides = [1, 1]} : vector<8x512xf32> to vector<8x256xf32>
    %14 = vector.extract_strided_slice %0 {offsets = [2, 0], sizes = [1, 256], strides = [1, 1]} : vector<9x256xf32> to vector<1x256xf32>
    %15 = vector.broadcast %14 : vector<1x256xf32> to vector<8x256xf32>
    %16 = arith.mulf %13, %15 : vector<8x256xf32>
    %17 = vector.extract_strided_slice %4 {offsets = [0, 255], sizes = [8, 256], strides = [1, 1]} : vector<8x512xf32> to vector<8x256xf32>
    %18 = vector.extract_strided_slice %0 {offsets = [3, 0], sizes = [1, 256], strides = [1, 1]} : vector<9x256xf32> to vector<1x256xf32>
    %19 = vector.broadcast %18 : vector<1x256xf32> to vector<8x256xf32>
    %20 = arith.mulf %17, %19 : vector<8x256xf32>
    %21 = vector.extract_strided_slice %4 {offsets = [0, 1], sizes = [8, 256], strides = [1, 1]} : vector<8x512xf32> to vector<8x256xf32>
    %22 = vector.extract_strided_slice %0 {offsets = [5, 0], sizes = [1, 256], strides = [1, 1]} : vector<9x256xf32> to vector<1x256xf32>
    %23 = vector.broadcast %22 : vector<1x256xf32> to vector<8x256xf32>
    %24 = arith.mulf %21, %23 : vector<8x256xf32>
    %25 = vector.extract_strided_slice %4 {offsets = [0, 15], sizes = [8, 256], strides = [1, 1]} : vector<8x512xf32> to vector<8x256xf32>
    %26 = vector.extract_strided_slice %0 {offsets = [6, 0], sizes = [1, 256], strides = [1, 1]} : vector<9x256xf32> to vector<1x256xf32>
    %27 = vector.broadcast %26 : vector<1x256xf32> to vector<8x256xf32>
    %28 = arith.mulf %25, %27 : vector<8x256xf32>
    %29 = vector.extract_strided_slice %4 {offsets = [0, 16], sizes = [8, 256], strides = [1, 1]} : vector<8x512xf32> to vector<8x256xf32>
    %30 = vector.extract_strided_slice %0 {offsets = [7, 0], sizes = [1, 256], strides = [1, 1]} : vector<9x256xf32> to vector<1x256xf32>
    %31 = vector.broadcast %30 : vector<1x256xf32> to vector<8x256xf32>
    %32 = arith.mulf %29, %31 : vector<8x256xf32>
    %33 = vector.extract_strided_slice %4 {offsets = [0, 17], sizes = [8, 256], strides = [1, 1]} : vector<8x512xf32> to vector<8x256xf32>
    %34 = vector.extract_strided_slice %0 {offsets = [8, 0], sizes = [1, 256], strides = [1, 1]} : vector<9x256xf32> to vector<1x256xf32>
    %35 = vector.broadcast %34 : vector<1x256xf32> to vector<8x256xf32>
    %36 = arith.mulf %33, %35 : vector<8x256xf32>
    %cst = arith.constant 1.000000e+00 : f32
    %37 = vector.broadcast %cst : f32 to vector<1x256xf32>
    %38 = tpu.concatenate %8, %12, %16, %20, %3, %24, %28, %32, %36, %37 in 0 : vector<8x256xf32>, vector<8x256xf32>, vector<8x256xf32>, vector<8x256xf32>, vector<8x256xf32>, vector<8x256xf32>, vector<8x256xf32>, vector<8x256xf32>, vector<8x256xf32>, vector<1x256xf32> -> vector<73x256xf32>
    %c0_6 = arith.constant 0 : index
    %c0_7 = arith.constant 0 : index
    %39 = vector.load %arg2[%c0_6, %c0_7] : memref<8x73xf32, #tpu.memory_space<vmem>>, vector<8x73xf32>
    %cst_8 = arith.constant dense<0.000000e+00> : vector<8x256xf32>
    %40 = tpu.matmul %39, %38, %cst_8 {dimension_numbers = #tpu.dot_dimension_numbers<[1], [0], [0], [1], [0, 0, 1, 1], [], []>} : vector<8x73xf32>, vector<73x256xf32>, vector<8x256xf32> -> vector<8x256xf32>
    %41 = tpu.concatenate %40, %40 in 1 : vector<8x256xf32>, vector<8x256xf32> -> vector<8x512xf32>
    %42 = vector.extract_strided_slice %41 {offsets = [0, 239], sizes = [8, 256], strides = [1, 1]} : vector<8x512xf32> to vector<8x256xf32>
    %43 = vector.extract_strided_slice %0 {offsets = [0, 0], sizes = [1, 256], strides = [1, 1]} : vector<9x256xf32> to vector<1x256xf32>
    %44 = vector.broadcast %43 : vector<1x256xf32> to vector<8x256xf32>
    %45 = arith.mulf %42, %44 : vector<8x256xf32>
    %46 = vector.extract_strided_slice %41 {offsets = [0, 240], sizes = [8, 256], strides = [1, 1]} : vector<8x512xf32> to vector<8x256xf32>
    %47 = vector.extract_strided_slice %0 {offsets = [1, 0], sizes = [1, 256], strides = [1, 1]} : vector<9x256xf32> to vector<1x256xf32>
    %48 = vector.broadcast %47 : vector<1x256xf32> to vector<8x256xf32>
    %49 = arith.mulf %46, %48 : vector<8x256xf32>
    %50 = vector.extract_strided_slice %41 {offsets = [0, 241], sizes = [8, 256], strides = [1, 1]} : vector<8x512xf32> to vector<8x256xf32>
    %51 = vector.extract_strided_slice %0 {offsets = [2, 0], sizes = [1, 256], strides = [1, 1]} : vector<9x256xf32> to vector<1x256xf32>
    %52 = vector.broadcast %51 : vector<1x256xf32> to vector<8x256xf32>
    %53 = arith.mulf %50, %52 : vector<8x256xf32>
    %54 = vector.extract_strided_slice %41 {offsets = [0, 255], sizes = [8, 256], strides = [1, 1]} : vector<8x512xf32> to vector<8x256xf32>
    %55 = vector.extract_strided_slice %0 {offsets = [3, 0], sizes = [1, 256], strides = [1, 1]} : vector<9x256xf32> to vector<1x256xf32>
    %56 = vector.broadcast %55 : vector<1x256xf32> to vector<8x256xf32>
    %57 = arith.mulf %54, %56 : vector<8x256xf32>
    %58 = vector.extract_strided_slice %41 {offsets = [0, 1], sizes = [8, 256], strides = [1, 1]} : vector<8x512xf32> to vector<8x256xf32>
    %59 = vector.extract_strided_slice %0 {offsets = [5, 0], sizes = [1, 256], strides = [1, 1]} : vector<9x256xf32> to vector<1x256xf32>
    %60 = vector.broadcast %59 : vector<1x256xf32> to vector<8x256xf32>
    %61 = arith.mulf %58, %60 : vector<8x256xf32>
    %62 = vector.extract_strided_slice %41 {offsets = [0, 15], sizes = [8, 256], strides = [1, 1]} : vector<8x512xf32> to vector<8x256xf32>
    %63 = vector.extract_strided_slice %0 {offsets = [6, 0], sizes = [1, 256], strides = [1, 1]} : vector<9x256xf32> to vector<1x256xf32>
    %64 = vector.broadcast %63 : vector<1x256xf32> to vector<8x256xf32>
    %65 = arith.mulf %62, %64 : vector<8x256xf32>
    %66 = vector.extract_strided_slice %41 {offsets = [0, 16], sizes = [8, 256], strides = [1, 1]} : vector<8x512xf32> to vector<8x256xf32>
    %67 = vector.extract_strided_slice %0 {offsets = [7, 0], sizes = [1, 256], strides = [1, 1]} : vector<9x256xf32> to vector<1x256xf32>
    %68 = vector.broadcast %67 : vector<1x256xf32> to vector<8x256xf32>
    %69 = arith.mulf %66, %68 : vector<8x256xf32>
    %70 = vector.extract_strided_slice %41 {offsets = [0, 17], sizes = [8, 256], strides = [1, 1]} : vector<8x512xf32> to vector<8x256xf32>
    %71 = vector.extract_strided_slice %0 {offsets = [8, 0], sizes = [1, 256], strides = [1, 1]} : vector<9x256xf32> to vector<1x256xf32>
    %72 = vector.broadcast %71 : vector<1x256xf32> to vector<8x256xf32>
    %73 = arith.mulf %70, %72 : vector<8x256xf32>
    %cst_9 = arith.constant 1.000000e+00 : f32
    %74 = vector.broadcast %cst_9 : f32 to vector<1x256xf32>
    %75 = tpu.concatenate %45, %49, %53, %57, %40, %61, %65, %69, %73, %74 in 0 : vector<8x256xf32>, vector<8x256xf32>, vector<8x256xf32>, vector<8x256xf32>, vector<8x256xf32>, vector<8x256xf32>, vector<8x256xf32>, vector<8x256xf32>, vector<8x256xf32>, vector<1x256xf32> -> vector<73x256xf32>
    %c0_10 = arith.constant 0 : index
    %c0_11 = arith.constant 0 : index
    %76 = vector.load %arg3[%c0_10, %c0_11] : memref<8x73xf32, #tpu.memory_space<vmem>>, vector<8x73xf32>
    %cst_12 = arith.constant dense<0.000000e+00> : vector<8x256xf32>
    %77 = tpu.matmul %76, %75, %cst_12 {dimension_numbers = #tpu.dot_dimension_numbers<[1], [0], [0], [1], [0, 0, 1, 1], [], []>} : vector<8x73xf32>, vector<73x256xf32>, vector<8x256xf32> -> vector<8x256xf32>
    %78 = tpu.concatenate %77, %77 in 1 : vector<8x256xf32>, vector<8x256xf32> -> vector<8x512xf32>
    %79 = vector.extract_strided_slice %78 {offsets = [0, 1], sizes = [8, 256], strides = [1, 1]} : vector<8x512xf32> to vector<8x256xf32>
    %80 = vector.extract_strided_slice %1 {offsets = [0, 0], sizes = [1, 256], strides = [1, 1]} : vector<4x256xf32> to vector<1x256xf32>
    %81 = vector.broadcast %80 : vector<1x256xf32> to vector<8x256xf32>
    %82 = arith.addf %79, %81 : vector<8x256xf32>
    %83 = arith.maximumf %77, %82 : vector<8x256xf32>
    %84 = vector.extract_strided_slice %78 {offsets = [0, 2], sizes = [8, 256], strides = [1, 1]} : vector<8x512xf32> to vector<8x256xf32>
    %85 = vector.extract_strided_slice %1 {offsets = [1, 0], sizes = [1, 256], strides = [1, 1]} : vector<4x256xf32> to vector<1x256xf32>
    %86 = vector.broadcast %85 : vector<1x256xf32> to vector<8x256xf32>
    %87 = arith.addf %84, %86 : vector<8x256xf32>
    %88 = arith.maximumf %83, %87 : vector<8x256xf32>
    %89 = tpu.concatenate %88, %88 in 1 : vector<8x256xf32>, vector<8x256xf32> -> vector<8x512xf32>
    %90 = vector.extract_strided_slice %89 {offsets = [0, 16], sizes = [8, 256], strides = [1, 1]} : vector<8x512xf32> to vector<8x256xf32>
    %91 = vector.extract_strided_slice %1 {offsets = [2, 0], sizes = [1, 256], strides = [1, 1]} : vector<4x256xf32> to vector<1x256xf32>
    %92 = vector.broadcast %91 : vector<1x256xf32> to vector<8x256xf32>
    %93 = arith.addf %90, %92 : vector<8x256xf32>
    %94 = arith.maximumf %88, %93 : vector<8x256xf32>
    %95 = vector.extract_strided_slice %89 {offsets = [0, 32], sizes = [8, 256], strides = [1, 1]} : vector<8x512xf32> to vector<8x256xf32>
    %96 = vector.extract_strided_slice %1 {offsets = [3, 0], sizes = [1, 256], strides = [1, 1]} : vector<4x256xf32> to vector<1x256xf32>
    %97 = vector.broadcast %96 : vector<1x256xf32> to vector<8x256xf32>
    %98 = arith.addf %95, %97 : vector<8x256xf32>
    %99 = arith.maximumf %94, %98 : vector<8x256xf32>
    %c0_13 = arith.constant 0 : index
    %c0_14 = arith.constant 0 : index
    %100 = vector.load %arg6[%c0_13, %c0_14] : memref<256x36xf32, #tpu.memory_space<vmem>>, vector<256x36xf32>
    %cst_15 = arith.constant dense<0.000000e+00> : vector<8x36xf32>
    %101 = tpu.matmul %99, %100, %cst_15 {dimension_numbers = #tpu.dot_dimension_numbers<[1], [0], [0], [1], [0, 0, 1, 1], [], []>} : vector<8x256xf32>, vector<256x36xf32>, vector<8x36xf32> -> vector<8x36xf32>
    %c0_16 = arith.constant 0 : index
    %c0_17 = arith.constant 0 : index
    %c0_18 = arith.constant 0 : index
    %102 = vector.load %arg7[%c0_16, %c0_17, %c0_18] : memref<1x8x36xf32, #tpu.memory_space<vmem>>, vector<1x8x36xf32>
    %103 = vector.shape_cast %102 : vector<1x8x36xf32> to vector<8x36xf32>
    %104 = vector.shape_cast %101 : vector<8x36xf32> to vector<1x8x36xf32>
    tpu.vector_store %arg7[%c0_16, %c0_17, %c0_18], %104 {strides = array<i32>} : memref<1x8x36xf32, #tpu.memory_space<vmem>>, vector<1x8x36xf32>,
    return
  }
  func.func @transform_0(%arg0: i32) -> (i32, i32, i32) {
    %c0_i32 = arith.constant 0 : i32
    %c0_i32_0 = arith.constant 0 : i32
    %c0_i32_1 = arith.constant 0 : i32
    return %arg0, %c0_i32, %c0_i32_0 : i32, i32, i32
  }
  func.func @transform_1(%arg0: i32) -> (i32, i32) {
    %c0_i32 = arith.constant 0 : i32
    %c0_i32_0 = arith.constant 0 : i32
    %c0_i32_1 = arith.constant 0 : i32
    return %c0_i32, %c0_i32_0 : i32, i32
  }
  func.func @transform_2(%arg0: i32) -> (i32, i32) {
    %c0_i32 = arith.constant 0 : i32
    %c0_i32_0 = arith.constant 0 : i32
    %c0_i32_1 = arith.constant 0 : i32
    return %c0_i32, %c0_i32_0 : i32, i32
  }
  func.func @transform_3(%arg0: i32) -> (i32, i32) {
    %c0_i32 = arith.constant 0 : i32
    %c0_i32_0 = arith.constant 0 : i32
    %c0_i32_1 = arith.constant 0 : i32
    return %c0_i32, %c0_i32_0 : i32, i32
  }
  func.func @transform_4(%arg0: i32) -> (i32, i32) {
    %c0_i32 = arith.constant 0 : i32
    %c0_i32_0 = arith.constant 0 : i32
    %c0_i32_1 = arith.constant 0 : i32
    return %c0_i32, %c0_i32_0 : i32, i32
  }
  func.func @transform_5(%arg0: i32) -> (i32, i32) {
    %c0_i32 = arith.constant 0 : i32
    %c0_i32_0 = arith.constant 0 : i32
    %c0_i32_1 = arith.constant 0 : i32
    return %c0_i32, %c0_i32_0 : i32, i32
  }
  func.func @transform_6(%arg0: i32) -> (i32, i32, i32) {
    %c0_i32 = arith.constant 0 : i32
    %c0_i32_0 = arith.constant 0 : i32
    %c0_i32_1 = arith.constant 0 : i32
    return %arg0, %c0_i32, %c0_i32_0 : i32, i32, i32
  }
}

</mosaic_0001>

<llo_original>
// kernel: tpu_custom_call.1
$region0: #{tpu_custom_call.1}
  #allocation0 [shape = 'u32[]', space=smem, size = 0x4, offset = 0x4, fixed_abs, tag = 'smem constant byte address 0x4 - core index']
  #allocation1 [shape = 'u32[144,128]{1,0:T(1,128)}', space=vmem, size = 0x12000, scoped, tag = 'internal scratch']
  %s0 = inlined_call_operand.vmem [shape: f32[2,8,256], index: 0, kind: input, shape index: {}]
  %s1 = inlined_call_operand.vmem [shape: f32[8,73], index: 1, kind: input, shape index: {}]
  %s2 = inlined_call_operand.vmem [shape: f32[8,73], index: 2, kind: input, shape index: {}]
  %s3 = inlined_call_operand.vmem [shape: f32[9,256], index: 3, kind: input, shape index: {}]
  %s4 = inlined_call_operand.vmem [shape: f32[4,256], index: 4, kind: input, shape index: {}]
  %s5 = inlined_call_operand.vmem [shape: f32[256,36], index: 5, kind: input, shape index: {}]
  %s6 = inlined_call_operand.hbm [shape: f32[2,8,36], index: 6, kind: output, shape index: {}]
  %s7 = sld [smem:[#allocation0]]
  $region57: #{tpu_custom_call.1} parent=0
    _
  %s9 = ssub.s32 1, %s7
  %s10 = scalar_select 0, %s9, %s7
  $region1: #{tpu_custom_call.1} parent=0
    #allocation2 [shape = 'u8[8192]{0}', space=vmem, size = 0x2000, scoped, tag = 'output window, operand 0']
    #allocation3 [shape = 's32[2]{0}', space=sflag, size = 0x8, scoped, tag = 'scoped memory for tpu_custom_call.1']
    %11 = vsyncpa [#allocation3], 0
    %s12 = scalar_lea.sflag [#allocation3], 1
    %13 = vsyncpa %s12, 0
    loop: start=0, step=1, limit=4
    $region2: #{tpu_custom_call.1} parent=1 // loop_pre_header
      _
    $region3: #{tpu_custom_call.1} parent=1 // loop_header
      %s15 = sphi 0, %s19
      %p16 = scmp.ge.s32.totalorder %s15, 4
      %s25 = sphi 0, %s27
      %s28 = sphi 0, %s25
      %s29 = sphi 0, %s28
      %s45 = sphi 0, %s29
      %s49 = sphi 0, %s49
      %s51 = sphi 0, %s49
      %s52 = sphi 0, %s51
      %s66 = sphi 0, %s52
      %s70 = sphi 0, %s70
      %s72 = sphi 0, %s70
      %s73 = sphi 0, %s72
      %s87 = sphi 0, %s73
      %s91 = sphi 0, %s91
      %s93 = sphi 0, %s91
      %s94 = sphi 0, %s93
      %s108 = sphi 0, %s94
      %s112 = sphi 0, %s112
      %s114 = sphi 0, %s112
      %s115 = sphi 0, %s114
      %s129 = sphi 0, %s115
      %s133 = sphi 0, %s133
      %s135 = sphi 0, %s133
      %s136 = sphi 0, %s135
      %s150 = sphi 0, %s136
      %s156 = sphi 0, %s158
      %s159 = sphi 0, %s156
      %s160 = sphi 0, %s159
      %s176 = sphi 0, %s160
    $region4: #{tpu_custom_call.1} parent=1 // loop_header_branch
      %18 = sbr.rel (%p16) target = $region8
    $region5: #{tpu_custom_call.1} parent=1 // loop_body
      %s20 = ssub.s32 %s15, 1
      %s21 = ssub.s32 %s15, 2
      %s22 = sadd.s32 %s15, 1
      %s23 = ssub.s32 %s15, %s22
      %p24 = scmp.eq.s32.totalorder %s23, 0
      %s26 = sadd.s32 %s25, 1
      %s27 = scalar_select %p24, %s25, %s26
      %p30 = pneg %p24
      %p31 = scmp.eq.s32.totalorder %s15, 1
      %p32 = por %p30, %p31
      %p33 = scmp.ne.s32.totalorder %s25, %s28
      %p34 = scmp.eq.s32.totalorder %s15, 0
      %p35 = por %p33, %p34
      %p36 = scmp.ne.s32.totalorder %s25, %s28
      %p37 = scmp.eq.s32.totalorder %s20, 1
      %p38 = por %p36, %p37
      %p39 = scmp.ne.s32.totalorder %s28, %s29
      %p40 = scmp.eq.s32.totalorder %s20, 0
      %p41 = por %p39, %p40
      %p42 = scmp.ne.s32.totalorder %s28, %s29
      %p43 = scmp.eq.s32.totalorder %s21, 1
      %p44 = por %p42, %p43
      %p46 = scmp.ne.s32.totalorder %s29, %s45
      %p47 = scmp.eq.s32.totalorder %s21, 0
      %p48 = por %p46, %p47
      %s50 = sadd.s32 %s49, 1
      %p53 = scmp.eq.s32.totalorder %s15, 1
      %p54 = scmp.ne.s32.totalorder %s49, %s51
      %p55 = scmp.eq.s32.totalorder %s15, 0
      %p56 = por %p54, %p55
      %p57 = scmp.ne.s32.totalorder %s49, %s51
      %p58 = scmp.eq.s32.totalorder %s20, 1
      %p59 = por %p57, %p58
      %p60 = scmp.ne.s32.totalorder %s51, %s52
      %p61 = scmp.eq.s32.totalorder %s20, 0
      %p62 = por %p60, %p61
      %p63 = scmp.ne.s32.totalorder %s51, %s52
      %p64 = scmp.eq.s32.totalorder %s21, 1
      %p65 = por %p63, %p64
      %p67 = scmp.ne.s32.totalorder %s52, %s66
      %p68 = scmp.eq.s32.totalorder %s21, 0
      %p69 = por %p67, %p68
      %s71 = sadd.s32 %s70, 1
      %p74 = scmp.eq.s32.totalorder %s15, 1
      %p75 = scmp.ne.s32.totalorder %s70, %s72
      %p76 = scmp.eq.s32.totalorder %s15, 0
      %p77 = por %p75, %p76
      %p78 = scmp.ne.s32.totalorder %s70, %s72
      %p79 = scmp.eq.s32.totalorder %s20, 1
      %p80 = por %p78, %p79
      %p81 = scmp.ne.s32.totalorder %s72, %s73
      %p82 = scmp.eq.s32.totalorder %s20, 0
      %p83 = por %p81, %p82
      %p84 = scmp.ne.s32.totalorder %s72, %s73
      %p85 = scmp.eq.s32.totalorder %s21, 1
      %p86 = por %p84, %p85
      %p88 = scmp.ne.s32.totalorder %s73, %s87
      %p89 = scmp.eq.s32.totalorder %s21, 0
      %p90 = por %p88, %p89
      %s92 = sadd.s32 %s91, 1
      %p95 = scmp.eq.s32.totalorder %s15, 1
      %p96 = scmp.ne.s32.totalorder %s91, %s93
      %p97 = scmp.eq.s32.totalorder %s15, 0
      %p98 = por %p96, %p97
      %p99 = scmp.ne.s32.totalorder %s91, %s93
      %p100 = scmp.eq.s32.totalorder %s20, 1
      %p101 = por %p99, %p100
      %p102 = scmp.ne.s32.totalorder %s93, %s94
      %p103 = scmp.eq.s32.totalorder %s20, 0
      %p104 = por %p102, %p103
      %p105 = scmp.ne.s32.totalorder %s93, %s94
      %p106 = scmp.eq.s32.totalorder %s21, 1
      %p107 = por %p105, %p106
      %p109 = scmp.ne.s32.totalorder %s94, %s108
      %p110 = scmp.eq.s32.totalorder %s21, 0
      %p111 = por %p109, %p110
      %s113 = sadd.s32 %s112, 1
      %p116 = scmp.eq.s32.totalorder %s15, 1
      %p117 = scmp.ne.s32.totalorder %s112, %s114
      %p118 = scmp.eq.s32.totalorder %s15, 0
      %p119 = por %p117, %p118
      %p120 = scmp.ne.s32.totalorder %s112, %s114
      %p121 = scmp.eq.s32.totalorder %s20, 1
      %p122 = por %p120, %p121
      %p123 = scmp.ne.s32.totalorder %s114, %s115
      %p124 = scmp.eq.s32.totalorder %s20, 0
      %p125 = por %p123, %p124
      %p126 = scmp.ne.s32.totalorder %s114, %s115
      %p127 = scmp.eq.s32.totalorder %s21, 1
      %p128 = por %p126, %p127
      %p130 = scmp.ne.s32.totalorder %s115, %s129
      %p131 = scmp.eq.s32.totalorder %s21, 0
      %p132 = por %p130, %p131
      %s134 = sadd.s32 %s133, 1
      %p137 = scmp.eq.s32.totalorder %s15, 1
      %p138 = scmp.ne.s32.totalorder %s133, %s135
      %p139 = scmp.eq.s32.totalorder %s15, 0
      %p140 = por %p138, %p139
      %p141 = scmp.ne.s32.totalorder %s133, %s135
      %p142 = scmp.eq.s32.totalorder %s20, 1
      %p143 = por %p141, %p142
      %p144 = scmp.ne.s32.totalorder %s135, %s136
      %p145 = scmp.eq.s32.totalorder %s20, 0
      %p146 = por %p144, %p145
      %p147 = scmp.ne.s32.totalorder %s135, %s136
      %p148 = scmp.eq.s32.totalorder %s21, 1
      %p149 = por %p147, %p148
      %p151 = scmp.ne.s32.totalorder %s136, %s150
      %p152 = scmp.eq.s32.totalorder %s21, 0
      %p153 = por %p151, %p152
      %s154 = ssub.s32 %s15, %s22
      %p155 = scmp.eq.s32.totalorder %s154, 0
      %s157 = sadd.s32 %s156, 1
      %s158 = scalar_select %p155, %s156, %s157
      %p161 = pneg %p155
      %p162 = scmp.eq.s32.totalorder %s15, 1
      %p163 = por %p161, %p162
      %p164 = scmp.ne.s32.totalorder %s156, %s159
      %p165 = scmp.eq.s32.totalorder %s15, 0
      %p166 = por %p164, %p165
      %p167 = scmp.ne.s32.totalorder %s156, %s159
      %p168 = scmp.eq.s32.totalorder %s20, 1
      %p169 = por %p167, %p168
      %p170 = scmp.ne.s32.totalorder %s159, %s160
      %p171 = scmp.eq.s32.totalorder %s20, 0
      %p172 = por %p170, %p171
      %p173 = scmp.ne.s32.totalorder %s159, %s160
      %p174 = scmp.eq.s32.totalorder %s21, 1
      %p175 = por %p173, %p174
      %p177 = scmp.ne.s32.totalorder %s160, %s176
      %p178 = scmp.eq.s32.totalorder %s21, 0
      %p179 = por %p177, %p178
      %p180 = scmp.le.s32.totalorder 1, %s15
      %p181 = scmp.lt.s32.totalorder %s15, 3
      %p182 = pnand %p180, %p181
      %p183 = pneg %p182
      // Predicated region
      $region9: #{tpu_custom_call.1} parent=5 // pred_check
        _
      $region10: #{tpu_custom_call.1} parent=5 // pred_check_branch
        %185 = sbr.rel (%p182) target = $region12
      $region11: #{tpu_custom_call.1} parent=5 // pred_region
        %s186 = ssub.s32 %s15, 1
        // Predicated region
        $region13: #{tpu_custom_call.1} parent=11 // pred_check
          %p187 = pneg %p62
        $region14: #{tpu_custom_call.1} parent=11 // pred_check_branch
          %189 = sbr.rel (%p187) target = $region16
        $region15: #{tpu_custom_call.1} parent=11 // pred_region
          _
        $region16: #{tpu_custom_call.1} parent=11 // pred_fallthru
          _
        // Predicated region
        $region17: #{tpu_custom_call.1} parent=11 // pred_check
          %p190 = pneg %p83
        $region18: #{tpu_custom_call.1} parent=11 // pred_check_branch
          %192 = sbr.rel (%p190) target = $region20
        $region19: #{tpu_custom_call.1} parent=11 // pred_region
          _
        $region20: #{tpu_custom_call.1} parent=11 // pred_fallthru
          _
        // Predicated region
        $region21: #{tpu_custom_call.1} parent=11 // pred_check
          %p193 = pneg %p104
        $region22: #{tpu_custom_call.1} parent=11 // pred_check_branch
          %195 = sbr.rel (%p193) target = $region24
        $region23: #{tpu_custom_call.1} parent=11 // pred_region
          _
        $region24: #{tpu_custom_call.1} parent=11 // pred_fallthru
          _
        // Predicated region
        $region25: #{tpu_custom_call.1} parent=11 // pred_check
          %p196 = pneg %p125
        $region26: #{tpu_custom_call.1} parent=11 // pred_check_branch
          %198 = sbr.rel (%p196) target = $region28
        $region27: #{tpu_custom_call.1} parent=11 // pred_region
          _
        $region28: #{tpu_custom_call.1} parent=11 // pred_fallthru
          _
        // Predicated region
        $region29: #{tpu_custom_call.1} parent=11 // pred_check
          %p199 = pneg %p146
        $region30: #{tpu_custom_call.1} parent=11 // pred_check_branch
          %201 = sbr.rel (%p199) target = $region32
        $region31: #{tpu_custom_call.1} parent=11 // pred_region
          _
        $region32: #{tpu_custom_call.1} parent=11 // pred_fallthru
          _
      $region12: #{tpu_custom_call.1} parent=5 // pred_fallthru
        _
      %p202 = scmp.lt.s32.totalorder %s15, 2
      // Predicated region
      $region33: #{tpu_custom_call.1} parent=5 // pred_check
        %p203 = pneg %p202
      $region34: #{tpu_custom_call.1} parent=5 // pred_check_branch
        %205 = sbr.rel (%p203) target = $region36
      $region35: #{tpu_custom_call.1} parent=5 // pred_region
        // Predicated region
        $region37: #{tpu_custom_call.1} parent=35 // pred_check
          %p206 = pneg %p35
        $region38: #{tpu_custom_call.1} parent=35 // pred_check_branch
          %208 = sbr.rel (%p206) target = $region40
        $region39: #{tpu_custom_call.1} parent=35 // pred_region
          %p209 = scmp.lt.s32.totalorder %s15, 1
          %s210 = scalar_select %p209, %s15, 1
          %s211 = smul.addr %s210, 2
          %s212 = smul.addr %s211, 8
          %s213 = scalar_lea.vmem %s0, %s212
        $region40: #{tpu_custom_call.1} parent=35 // pred_fallthru
          _
      $region36: #{tpu_custom_call.1} parent=5 // pred_fallthru
        _
      %p214 = scmp.le.s32.totalorder 1, %s15
      %p215 = scmp.lt.s32.totalorder %s15, 3
      %p216 = pnand %p214, %p215
      %p217 = pneg %p216
      // Predicated region
      $region41: #{tpu_custom_call.1} parent=5 // pred_check
        _
      $region42: #{tpu_custom_call.1} parent=5 // pred_check_branch
        %219 = sbr.rel (%p216) target = $region44
      $region43: #{tpu_custom_call.1} parent=5 // pred_region
        %s220 = ssub.s32 %s15, 1
        %p221 = scmp.lt.s32.totalorder %s20, 1
        %s222 = scalar_select %p221, %s20, 1
        %s223 = smul.addr %s222, 2
        %s224 = smul.addr %s223, 8
        %s225 = scalar_lea.vmem %s0, %s224
        %p226 = pneg %p41
        %p227 = pneg %p38
        %p228 = pneg %p62
        %p229 = pneg %p59
        %p230 = pneg %p83
        %p231 = pneg %p80
        %p232 = pneg %p104
        %p233 = pneg %p101
        %p234 = pneg %p125
        %p235 = pneg %p122
        %p236 = pneg %p146
        %p237 = pneg %p143
        %p238 = pneg %p172
        %p239 = pneg %p169
        %s240 = sand.u32 %s159, 1
        %s241 = scalar_lea.sflag [#allocation3], %s240
        %s242 = sand.u32 %s159, 1
        %s243 = smul.addr %s242, 8
        %s244 = scalar_lea.vmem [#allocation2], %s243
        %p245 = scmp.lt.s32.totalorder %s20, 1
        %s246 = scalar_select %p245, %s20, 1
        %s247 = smul.addr %s246, 2
        %s248 = smul.addr %s247, 8
        %s249 = scalar_lea.vmem %s0, %s248
        %v250 = vld [vmem:[%s3] sm:$0xff]
        %v251 = vld [vmem:[%s3 + $0x8] sm:$0xff]
        %v252 = vld [vmem:[%s3 + $0x10] sm:$0x1]
        %v253 = vld [vmem:[%s3 + $0x18] sm:$0x1]
        %v254 = vld [vmem:[%s4] sm:$0xff]
        %v255 = vld [vmem:[%s249] sm:$0xff]
        %v256 = vld [vmem:[%s249 + $0x8] sm:$0xff]
        %v257 = vlaneseq
        %v258 = vshrl.u32 %v257, 7
        %v259 = vsub.s32 0, %v258
        %v260 = vrot.slane %v250, %v259
        %v261 = vlaneseq
        %v262 = vshrl.u32 %v261, 7
        %v263 = vsub.s32 0, %v262
        %v264 = vrot.slane %v251, %v263
        %267 = vrot.lane.b32.xlu0 %v260, 111
        %v268 = vpop.permute.xlu0 %267
        %269 = vrot.lane.b32.xlu0 %v264, 111
        %v270 = vpop.permute.xlu0 %269
        %vm271 = vcmask 908288
        %v272 = vsel %vm271, %v268, %v270
        %v276 = vmul.f32 %v256, %v268
        %v277 = vmul.f32 %v255, %v272
        %v278 = vmul.f32 %v256, %v270
        %v279 = vlaneseq
        %v280 = vshrl.u32 %v279, 7
        %v281 = vsub.s32 1, %v280
        %v282 = vrot.slane %v250, %v281
        %v283 = vlaneseq
        %v284 = vshrl.u32 %v283, 7
        %v285 = vsub.s32 1, %v284
        %v286 = vrot.slane %v251, %v285
        %289 = vrot.lane.b32.xlu0 %v282, 112
        %v290 = vpop.permute.xlu0 %289
        %291 = vrot.lane.b32.xlu0 %v286, 112
        %v292 = vpop.permute.xlu0 %291
        %vm293 = vcmask 916480
        %v294 = vsel %vm293, %v290, %v292
        %v298 = vmul.f32 %v256, %v290
        %v299 = vmul.f32 %v255, %v294
        %v300 = vmul.f32 %v256, %v292
        %v301 = vlaneseq
        %v302 = vshrl.u32 %v301, 7
        %v303 = vsub.s32 2, %v302
        %v304 = vrot.slane %v250, %v303
        %v305 = vlaneseq
        %v306 = vshrl.u32 %v305, 7
        %v307 = vsub.s32 2, %v306
        %v308 = vrot.slane %v251, %v307
        %311 = vrot.lane.b32.xlu0 %v304, 113
        %v312 = vpop.permute.xlu0 %311
        %313 = vrot.lane.b32.xlu0 %v308, 113
        %v314 = vpop.permute.xlu0 %313
        %vm315 = vcmask 924672
        %v316 = vsel %vm315, %v312, %v314
        %v320 = vmul.f32 %v256, %v312
        %v321 = vmul.f32 %v255, %v316
        %v322 = vmul.f32 %v256, %v314
        %v323 = vlaneseq
        %v324 = vshrl.u32 %v323, 7
        %v325 = vsub.s32 3, %v324
        %v326 = vrot.slane %v250, %v325
        %v327 = vlaneseq
        %v328 = vshrl.u32 %v327, 7
        %v329 = vsub.s32 3, %v328
        %v330 = vrot.slane %v251, %v329
        %333 = vrot.lane.b32.xlu0 %v326, 127
        %v334 = vpop.permute.xlu0 %333
        %335 = vrot.lane.b32.xlu0 %v330, 127
        %v336 = vpop.permute.xlu0 %335
        %vm337 = vcmask 1039360
        %v338 = vsel %vm337, %v334, %v336
        %v342 = vmul.f32 %v256, %v334
        %v343 = vmul.f32 %v255, %v338
        %v344 = vmul.f32 %v256, %v336
        %v345 = vlaneseq
        %v346 = vshrl.u32 %v345, 7
        %v347 = vsub.s32 5, %v346
        %v348 = vrot.slane %v250, %v347
        %v349 = vlaneseq
        %v350 = vshrl.u32 %v349, 7
        %v351 = vsub.s32 5, %v350
        %v352 = vrot.slane %v251, %v351
        %355 = vrot.lane.b32.xlu0 %v348, 1
        %v356 = vpop.permute.xlu0 %355
        %357 = vrot.lane.b32.xlu0 %v352, 1
        %v358 = vpop.permute.xlu0 %357
        %vm359 = vcmask 7168
        %v360 = vsel %vm359, %v356, %v358
        %v364 = vmul.f32 %v255, %v356
        %v365 = vmul.f32 %v256, %v360
        %v366 = vmul.f32 %v255, %v358
        %v367 = vlaneseq
        %v368 = vshrl.u32 %v367, 7
        %v369 = vsub.s32 6, %v368
        %v370 = vrot.slane %v250, %v369
        %v371 = vlaneseq
        %v372 = vshrl.u32 %v371, 7
        %v373 = vsub.s32 6, %v372
        %v374 = vrot.slane %v251, %v373
        %377 = vrot.lane.b32.xlu0 %v370, 15
        %v378 = vpop.permute.xlu0 %377
        %379 = vrot.lane.b32.xlu0 %v374, 15
        %v380 = vpop.permute.xlu0 %379
        %vm381 = vcmask 121856
        %v382 = vsel %vm381, %v378, %v380
        %v386 = vmul.f32 %v255, %v378
        %v387 = vmul.f32 %v256, %v382
        %v388 = vmul.f32 %v255, %v380
        %v389 = vlaneseq
        %v390 = vshrl.u32 %v389, 7
        %v391 = vsub.s32 7, %v390
        %v392 = vrot.slane %v250, %v391
        %v393 = vlaneseq
        %v394 = vshrl.u32 %v393, 7
        %v395 = vsub.s32 7, %v394
        %v396 = vrot.slane %v251, %v395
        %399 = vrot.lane.b32.xlu0 %v392, 16
        %v400 = vpop.permute.xlu0 %399
        %401 = vrot.lane.b32.xlu0 %v396, 16
        %v402 = vpop.permute.xlu0 %401
        %vm403 = vcmask 130048
        %v404 = vsel %vm403, %v400, %v402
        %v408 = vmul.f32 %v255, %v400
        %v409 = vmul.f32 %v256, %v404
        %v410 = vmul.f32 %v255, %v402
        %v411 = vlaneseq
        %v412 = vshrl.u32 %v411, 7
        %v413 = vsub.s32 0, %v412
        %v414 = vrot.slane %v252, %v413
        %v415 = vlaneseq
        %v416 = vshrl.u32 %v415, 7
        %v417 = vsub.s32 0, %v416
        %v418 = vrot.slane %v253, %v417
        %421 = vrot.lane.b32.xlu0 %v414, 17
        %v422 = vpop.permute.xlu0 %421
        %423 = vrot.lane.b32.xlu0 %v418, 17
        %v424 = vpop.permute.xlu0 %423
        %vm425 = vcmask 138240
        %v426 = vsel %vm425, %v422, %v424
        %v430 = vmul.f32 %v255, %v422
        %v431 = vmul.f32 %v256, %v426
        %v432 = vmul.f32 %v255, %v424
        %436 = vrot.lane.b32.xlu0 %v298, 127
        %v437 = vpop.permute.xlu0 %436
        %438 = vrot.lane.b32.xlu0 %v299, 127
        %v439 = vpop.permute.xlu0 %438
        %440 = vrot.lane.b32.xlu0 %v300, 127
        %v441 = vpop.permute.xlu0 %440
        %v442 = vsel %vm337, %v437, %v439
        %v443 = vsel %vm337, %v439, %v441
        %447 = vrot.lane.b32.xlu0 %v320, 126
        %v448 = vpop.permute.xlu0 %447
        %449 = vrot.lane.b32.xlu0 %v321, 126
        %v450 = vpop.permute.xlu0 %449
        %451 = vrot.lane.b32.xlu0 %v322, 126
        %v452 = vpop.permute.xlu0 %451
        %vm453 = vcmask 1031168
        %v454 = vsel %vm453, %v448, %v450
        %v455 = vsel %vm453, %v450, %v452
        %459 = vrot.lane.b32.xlu0 %v342, 112
        %v460 = vpop.permute.xlu0 %459
        %461 = vrot.lane.b32.xlu0 %v343, 112
        %v462 = vpop.permute.xlu0 %461
        %463 = vrot.lane.b32.xlu0 %v344, 112
        %v464 = vpop.permute.xlu0 %463
        %v465 = vsel %vm293, %v460, %v462
        %v466 = vsel %vm293, %v462, %v464
        %469 = vrot.lane.b32.xlu0 %v255, 111
        %v470 = vpop.permute.xlu0 %469
        %471 = vrot.lane.b32.xlu0 %v256, 111
        %v472 = vpop.permute.xlu0 %471
        %v473 = vsel %vm271, %v470, %v472
        %477 = vrot.lane.b32.xlu0 %v364, 110
        %v478 = vpop.permute.xlu0 %477
        %479 = vrot.lane.b32.xlu0 %v365, 110
        %v480 = vpop.permute.xlu0 %479
        %481 = vrot.lane.b32.xlu0 %v366, 110
        %v482 = vpop.permute.xlu0 %481
        %vm483 = vcmask 900096
        %v484 = vsel %vm483, %v478, %v480
        %v485 = vsel %vm483, %v480, %v482
        %489 = vrot.lane.b32.xlu0 %v386, 96
        %v490 = vpop.permute.xlu0 %489
        %491 = vrot.lane.b32.xlu0 %v387, 96
        %v492 = vpop.permute.xlu0 %491
        %493 = vrot.lane.b32.xlu0 %v388, 96
        %v494 = vpop.permute.xlu0 %493
        %vm495 = vcmask 785408
        %v496 = vsel %vm495, %v490, %v492
        %v497 = vsel %vm495, %v492, %v494
        %501 = vrot.lane.b32.xlu0 %v408, 95
        %v502 = vpop.permute.xlu0 %501
        %503 = vrot.lane.b32.xlu0 %v409, 95
        %v504 = vpop.permute.xlu0 %503
        %505 = vrot.lane.b32.xlu0 %v410, 95
        %v506 = vpop.permute.xlu0 %505
        %vm507 = vcmask 777216
        %v508 = vsel %vm507, %v502, %v504
        %v509 = vsel %vm507, %v504, %v506
        %513 = vrot.lane.b32.xlu0 %v430, 94
        %v514 = vpop.permute.xlu0 %513
        %515 = vrot.lane.b32.xlu0 %v431, 94
        %v516 = vpop.permute.xlu0 %515
        %517 = vrot.lane.b32.xlu0 %v432, 94
        %v518 = vpop.permute.xlu0 %517
        %vm519 = vcmask 769024
        %v520 = vsel %vm519, %v514, %v516
        %v521 = vsel %vm519, %v516, %v518
        %v522 = vld [vmem:[%s1] sm:$0xff]
        %527 = vrot.lane.b32.xlu0 %v276, 17
        %v528 = vpop.permute.xlu0 %527
        %529 = vrot.lane.b32.xlu0 %v277, 17
        %v530 = vpop.permute.xlu0 %529
        %531 = vrot.lane.b32.xlu0 %v278, 17
        %v532 = vpop.permute.xlu0 %531
        %533 = vrot.lane.b32.xlu0 %v442, 17
        %v534 = vpop.permute.xlu0 %533
        %535 = vrot.lane.b32.xlu0 %v443, 17
        %v536 = vpop.permute.xlu0 %535
        %537 = vrot.lane.b32.xlu0 %v441, 17
        %v538 = vpop.permute.xlu0 %537
        %539 = vrot.lane.b32.xlu0 %v454, 17
        %v540 = vpop.permute.xlu0 %539
        %541 = vrot.lane.b32.xlu0 %v455, 17
        %v542 = vpop.permute.xlu0 %541
        %543 = vrot.lane.b32.xlu0 %v452, 17
        %v544 = vpop.permute.xlu0 %543
        %545 = vrot.lane.b32.xlu0 %v465, 17
        %v546 = vpop.permute.xlu0 %545
        %547 = vrot.lane.b32.xlu0 %v466, 17
        %v548 = vpop.permute.xlu0 %547
        %549 = vrot.lane.b32.xlu0 %v464, 17
        %v550 = vpop.permute.xlu0 %549
        %551 = vrot.lane.b32.xlu0 %v470, 17
        %v552 = vpop.permute.xlu0 %551
        %553 = vrot.lane.b32.xlu0 %v473, 17
        %v554 = vpop.permute.xlu0 %553
        %555 = vrot.lane.b32.xlu0 %v472, 17
        %v556 = vpop.permute.xlu0 %555
        %557 = vrot.lane.b32.xlu0 %v478, 17
        %v558 = vpop.permute.xlu0 %557
        %559 = vrot.lane.b32.xlu0 %v484, 17
        %v560 = vpop.permute.xlu0 %559
        %561 = vrot.lane.b32.xlu0 %v485, 17
        %v562 = vpop.permute.xlu0 %561
        %563 = vrot.lane.b32.xlu0 %v490, 17
        %v564 = vpop.permute.xlu0 %563
        %565 = vrot.lane.b32.xlu0 %v496, 17
        %v566 = vpop.permute.xlu0 %565
        %567 = vrot.lane.b32.xlu0 %v497, 17
        %v568 = vpop.permute.xlu0 %567
        %569 = vrot.lane.b32.xlu0 %v502, 17
        %v570 = vpop.permute.xlu0 %569
        %571 = vrot.lane.b32.xlu0 %v508, 17
        %v572 = vpop.permute.xlu0 %571
        %573 = vrot.lane.b32.xlu0 %v509, 17
        %v574 = vpop.permute.xlu0 %573
        %575 = vrot.lane.b32.xlu0 %v514, 17
        %v576 = vpop.permute.xlu0 %575
        %577 = vrot.lane.b32.xlu0 %v520, 17
        %v578 = vpop.permute.xlu0 %577
        %579 = vrot.lane.b32.xlu0 %v521, 17
        %v580 = vpop.permute.xlu0 %579
        %581 = vrot.lane.b32.xlu0 1.0, 17
        %v582 = vpop.permute.xlu0 %581
        %v583 = vsel %vm425, %v528, %v530
        %v584 = vsel %vm425, %v530, %v532
        %v585 = vsel %vm425, %v534, %v536
        %v586 = vsel %vm425, %v536, %v538
        %v587 = vsel %vm425, %v540, %v542
        %v588 = vsel %vm425, %v542, %v544
        %v589 = vsel %vm425, %v546, %v548
        %v590 = vsel %vm425, %v548, %v550
        %v591 = vsel %vm425, %v552, %v554
        %v592 = vsel %vm425, %v554, %v556
        %v593 = vsel %vm425, %v558, %v560
        %v594 = vsel %vm425, %v560, %v562
        %v595 = vsel %vm425, %v564, %v566
        %v596 = vsel %vm425, %v566, %v568
        %v597 = vsel %vm425, %v570, %v572
        %v598 = vsel %vm425, %v572, %v574
        %v599 = vsel %vm425, %v576, %v578
        %v600 = vsel %vm425, %v578, %v580
        %vm619 = vcmask 596992
        %v621 = vsel %vm619, %v522, 0
        %vm623 = vcmask 1040384
        %v624 = vsel %vm623, %v582, 0
        %626 = vmatprep.subr.mxu0 %v584
        %627 = vmatpush1.msra.mxu0 %v583
        %628 = vmatprep.subr.mxu0 %v586
        %629 = vmatpush1.msra.mxu0 %v585
        %630 = vmatprep.subr.mxu0 %v588
        %631 = vmatpush1.msra.mxu0 %v587
        %632 = vmatprep.subr.mxu0 %v590
        %633 = vmatpush1.msra.mxu0 %v589
        %634 = vmatprep.subr.mxu0 %v592
        %635 = vmatpush1.msra.mxu0 %v591
        %636 = vmatprep.subr.mxu0 %v594
        %637 = vmatpush1.msra.mxu0 %v593
        %638 = vmatprep.subr.mxu0 %v596
        %639 = vmatpush1.msra.mxu0 %v595
        %640 = vmatprep.subr.mxu0 %v598
        %641 = vmatpush1.msra.mxu0 %v597
        %642 = vmatprep.subr.mxu0 %v600
        %643 = vmatpush1.msra.mxu0 %v599
        %644 = vmatprep.subr.mxu0 %v624
        %645 = vmatpush1.msra.mxu0 %v624
        %646 = vmatprep.subr.mxu0 0.0
        %647 = vmatpush1.msra.mxu0 0.0
        %648 = vmatprep.subr.mxu0 0.0
        %649 = vmatpush1.msra.mxu0 0.0
        %650 = vmatprep.subr.mxu0 0.0
        %651 = vmatpush1.msra.mxu0 0.0
        %652 = vmatprep.subr.mxu0 0.0
        %653 = vmatpush1.msra.mxu0 0.0
        %654 = vmatprep.subr.mxu0 0.0
        %655 = vmatpush1.msra.mxu0 0.0
        %656 = vmatprep.subr.mxu0 0.0
        %657 = vmatpush1.msra.mxu0 0.0
        %658 = vmatprep.subr.mxu0 0.0
        %659 = vmatpush1.msra.mxu0 0.0
        %660 = vmatprep.subr.mxu0 0.0
        %661 = vmatpush1.msra.mxu0 0.0
        %662 = vmatprep.subr.mxu0 0.0
        %663 = vmatpush1.msra.mxu0 0.0
        %664 = vmatprep.subr.mxu0 0.0
        %665 = vmatpush1.msra.mxu0 0.0
        %666 = vmatprep.subr.mxu0 0.0
        %667 = vmatpush1.msra.mxu0 0.0
        %668 = vmatprep.subr.mxu0 0.0
        %669 = vmatpush1.msra.mxu0 0.0
        %670 = vmatprep.subr.mxu0 0.0
        %671 = vmatpush1.msra.mxu0 0.0
        %672 = vmatprep.subr.mxu0 0.0
        %673 = vmatpush1.msra.mxu0 0.0
        %674 = vmatprep.subr.mxu0 0.0
        %675 = vmatpush1.msra.mxu0 0.0
        %676 = vmatprep.subr.mxu0 0.0
        %677 = vmatpush1.msra.mxu0 0.0
        %678 = vmatprep.subr.mxu0 0.0
        %679 = vmatpush1.msra.mxu0 0.0
        %680 = vmatprep.subr.mxu0 0.0
        %681 = vmatpush1.msra.mxu0 0.0
        %682 = vmatprep.subr.mxu0 0.0
        %683 = vmatpush1.msra.mxu0 0.0
        %684 = vmatprep.subr.mxu0 0.0
        %685 = vmatpush1.msra.mxu0 0.0
        %686 = vmatprep.subr.mxu0 0.0
        %687 = vmatpush1.msra.mxu0 0.0
        %688 = vmatprep.subr.mxu0 0.0
        %689 = vmatpush1.msra.mxu0 0.0
        %690 = vmatprep.mubr.f32.mxu0 0.0
        %691 = vmatmul.mubr.f32.gmra.mrb[0].mxu0 %v621
        %v692 = vpop.f32.mrb[0].mxu0
        %v693 = vadd.f32 0.0, %v692
        %v694 = vpop.f32.mrb[0].mxu0
        %v695 = vadd.f32 0.0, %v694
        %696 = vdwg.mxu0
        %v697 = vmul.f32 %v695, %v268
        %v698 = vmul.f32 %v693, %v272
        %v699 = vmul.f32 %v695, %v270
        %v700 = vmul.f32 %v695, %v290
        %v701 = vmul.f32 %v693, %v294
        %v702 = vmul.f32 %v695, %v292
        %v703 = vmul.f32 %v695, %v312
        %v704 = vmul.f32 %v693, %v316
        %v705 = vmul.f32 %v695, %v314
        %v706 = vmul.f32 %v695, %v334
        %v707 = vmul.f32 %v693, %v338
        %v708 = vmul.f32 %v695, %v336
        %v709 = vmul.f32 %v693, %v356
        %v710 = vmul.f32 %v695, %v360
        %v711 = vmul.f32 %v693, %v358
        %v712 = vmul.f32 %v693, %v378
        %v713 = vmul.f32 %v695, %v382
        %v714 = vmul.f32 %v693, %v380
        %v715 = vmul.f32 %v693, %v400
        %v716 = vmul.f32 %v695, %v404
        %v717 = vmul.f32 %v693, %v402
        %v718 = vmul.f32 %v693, %v422
        %v719 = vmul.f32 %v695, %v426
        %v720 = vmul.f32 %v693, %v424
        %724 = vrot.lane.b32.xlu0 %v700, 127
        %v725 = vpop.permute.xlu0 %724
        %726 = vrot.lane.b32.xlu0 %v701, 127
        %v727 = vpop.permute.xlu0 %726
        %728 = vrot.lane.b32.xlu0 %v702, 127
        %v729 = vpop.permute.xlu0 %728
        %v730 = vsel %vm337, %v725, %v727
        %v731 = vsel %vm337, %v727, %v729
        %735 = vrot.lane.b32.xlu0 %v703, 126
        %v736 = vpop.permute.xlu0 %735
        %737 = vrot.lane.b32.xlu0 %v704, 126
        %v738 = vpop.permute.xlu0 %737
        %739 = vrot.lane.b32.xlu0 %v705, 126
        %v740 = vpop.permute.xlu0 %739
        %v741 = vsel %vm453, %v736, %v738
        %v742 = vsel %vm453, %v738, %v740
        %746 = vrot.lane.b32.xlu0 %v706, 112
        %v747 = vpop.permute.xlu0 %746
        %748 = vrot.lane.b32.xlu0 %v707, 112
        %v749 = vpop.permute.xlu0 %748
        %750 = vrot.lane.b32.xlu0 %v708, 112
        %v751 = vpop.permute.xlu0 %750
        %v752 = vsel %vm293, %v747, %v749
        %v753 = vsel %vm293, %v749, %v751
        %756 = vrot.lane.b32.xlu0 %v693, 111
        %v757 = vpop.permute.xlu0 %756
        %758 = vrot.lane.b32.xlu0 %v695, 111
        %v759 = vpop.permute.xlu0 %758
        %v760 = vsel %vm271, %v757, %v759
        %764 = vrot.lane.b32.xlu0 %v709, 110
        %v765 = vpop.permute.xlu0 %764
        %766 = vrot.lane.b32.xlu0 %v710, 110
        %v767 = vpop.permute.xlu0 %766
        %768 = vrot.lane.b32.xlu0 %v711, 110
        %v769 = vpop.permute.xlu0 %768
        %v770 = vsel %vm483, %v765, %v767
        %v771 = vsel %vm483, %v767, %v769
        %775 = vrot.lane.b32.xlu0 %v712, 96
        %v776 = vpop.permute.xlu0 %775
        %777 = vrot.lane.b32.xlu0 %v713, 96
        %v778 = vpop.permute.xlu0 %777
        %779 = vrot.lane.b32.xlu0 %v714, 96
        %v780 = vpop.permute.xlu0 %779
        %v781 = vsel %vm495, %v776, %v778
        %v782 = vsel %vm495, %v778, %v780
        %786 = vrot.lane.b32.xlu0 %v715, 95
        %v787 = vpop.permute.xlu0 %786
        %788 = vrot.lane.b32.xlu0 %v716, 95
        %v789 = vpop.permute.xlu0 %788
        %790 = vrot.lane.b32.xlu0 %v717, 95
        %v791 = vpop.permute.xlu0 %790
        %v792 = vsel %vm507, %v787, %v789
        %v793 = vsel %vm507, %v789, %v791
        %797 = vrot.lane.b32.xlu0 %v718, 94
        %v798 = vpop.permute.xlu0 %797
        %799 = vrot.lane.b32.xlu0 %v719, 94
        %v800 = vpop.permute.xlu0 %799
        %801 = vrot.lane.b32.xlu0 %v720, 94
        %v802 = vpop.permute.xlu0 %801
        %v803 = vsel %vm519, %v798, %v800
        %v804 = vsel %vm519, %v800, %v802
        %v805 = vld [vmem:[%s2] sm:$0xff]
        %809 = vrot.lane.b32.xlu0 %v697, 17
        %v810 = vpop.permute.xlu0 %809
        %811 = vrot.lane.b32.xlu0 %v698, 17
        %v812 = vpop.permute.xlu0 %811
        %813 = vrot.lane.b32.xlu0 %v699, 17
        %v814 = vpop.permute.xlu0 %813
        %815 = vrot.lane.b32.xlu0 %v730, 17
        %v816 = vpop.permute.xlu0 %815
        %817 = vrot.lane.b32.xlu0 %v731, 17
        %v818 = vpop.permute.xlu0 %817
        %819 = vrot.lane.b32.xlu0 %v729, 17
        %v820 = vpop.permute.xlu0 %819
        %821 = vrot.lane.b32.xlu0 %v741, 17
        %v822 = vpop.permute.xlu0 %821
        %823 = vrot.lane.b32.xlu0 %v742, 17
        %v824 = vpop.permute.xlu0 %823
        %825 = vrot.lane.b32.xlu0 %v740, 17
        %v826 = vpop.permute.xlu0 %825
        %827 = vrot.lane.b32.xlu0 %v752, 17
        %v828 = vpop.permute.xlu0 %827
        %829 = vrot.lane.b32.xlu0 %v753, 17
        %v830 = vpop.permute.xlu0 %829
        %831 = vrot.lane.b32.xlu0 %v751, 17
        %v832 = vpop.permute.xlu0 %831
        %833 = vrot.lane.b32.xlu0 %v757, 17
        %v834 = vpop.permute.xlu0 %833
        %835 = vrot.lane.b32.xlu0 %v760, 17
        %v836 = vpop.permute.xlu0 %835
        %837 = vrot.lane.b32.xlu0 %v759, 17
        %v838 = vpop.permute.xlu0 %837
        %839 = vrot.lane.b32.xlu0 %v765, 17
        %v840 = vpop.permute.xlu0 %839
        %841 = vrot.lane.b32.xlu0 %v770, 17
        %v842 = vpop.permute.xlu0 %841
        %843 = vrot.lane.b32.xlu0 %v771, 17
        %v844 = vpop.permute.xlu0 %843
        %845 = vrot.lane.b32.xlu0 %v776, 17
        %v846 = vpop.permute.xlu0 %845
        %847 = vrot.lane.b32.xlu0 %v781, 17
        %v848 = vpop.permute.xlu0 %847
        %849 = vrot.lane.b32.xlu0 %v782, 17
        %v850 = vpop.permute.xlu0 %849
        %851 = vrot.lane.b32.xlu0 %v787, 17
        %v852 = vpop.permute.xlu0 %851
        %853 = vrot.lane.b32.xlu0 %v792, 17
        %v854 = vpop.permute.xlu0 %853
        %855 = vrot.lane.b32.xlu0 %v793, 17
        %v856 = vpop.permute.xlu0 %855
        %857 = vrot.lane.b32.xlu0 %v798, 17
        %v858 = vpop.permute.xlu0 %857
        %859 = vrot.lane.b32.xlu0 %v803, 17
        %v860 = vpop.permute.xlu0 %859
        %861 = vrot.lane.b32.xlu0 %v804, 17
        %v862 = vpop.permute.xlu0 %861
        %v863 = vsel %vm425, %v810, %v812
        %v864 = vsel %vm425, %v812, %v814
        %v865 = vsel %vm425, %v816, %v818
        %v866 = vsel %vm425, %v818, %v820
        %v867 = vsel %vm425, %v822, %v824
        %v868 = vsel %vm425, %v824, %v826
        %v869 = vsel %vm425, %v828, %v830
        %v870 = vsel %vm425, %v830, %v832
        %v871 = vsel %vm425, %v834, %v836
        %v872 = vsel %vm425, %v836, %v838
        %v873 = vsel %vm425, %v840, %v842
        %v874 = vsel %vm425, %v842, %v844
        %v875 = vsel %vm425, %v846, %v848
        %v876 = vsel %vm425, %v848, %v850
        %v877 = vsel %vm425, %v852, %v854
        %v878 = vsel %vm425, %v854, %v856
        %v879 = vsel %vm425, %v858, %v860
        %v880 = vsel %vm425, %v860, %v862
        %v900 = vsel %vm619, %v805, 0
        %902 = vmatprep.subr.mxu0 %v864
        %903 = vmatpush1.msra.mxu0 %v863
        %904 = vmatprep.subr.mxu0 %v866
        %905 = vmatpush1.msra.mxu0 %v865
        %906 = vmatprep.subr.mxu0 %v868
        %907 = vmatpush1.msra.mxu0 %v867
        %908 = vmatprep.subr.mxu0 %v870
        %909 = vmatpush1.msra.mxu0 %v869
        %910 = vmatprep.subr.mxu0 %v872
        %911 = vmatpush1.msra.mxu0 %v871
        %912 = vmatprep.subr.mxu0 %v874
        %913 = vmatpush1.msra.mxu0 %v873
        %914 = vmatprep.subr.mxu0 %v876
        %915 = vmatpush1.msra.mxu0 %v875
        %916 = vmatprep.subr.mxu0 %v878
        %917 = vmatpush1.msra.mxu0 %v877
        %918 = vmatprep.subr.mxu0 %v880
        %919 = vmatpush1.msra.mxu0 %v879
        %920 = vmatprep.subr.mxu0 %v624
        %921 = vmatpush1.msra.mxu0 %v624
        %922 = vmatprep.subr.mxu0 0.0
        %923 = vmatpush1.msra.mxu0 0.0
        %924 = vmatprep.subr.mxu0 0.0
        %925 = vmatpush1.msra.mxu0 0.0
        %926 = vmatprep.subr.mxu0 0.0
        %927 = vmatpush1.msra.mxu0 0.0
        %928 = vmatprep.subr.mxu0 0.0
        %929 = vmatpush1.msra.mxu0 0.0
        %930 = vmatprep.subr.mxu0 0.0
        %931 = vmatpush1.msra.mxu0 0.0
        %932 = vmatprep.subr.mxu0 0.0
        %933 = vmatpush1.msra.mxu0 0.0
        %934 = vmatprep.subr.mxu0 0.0
        %935 = vmatpush1.msra.mxu0 0.0
        %936 = vmatprep.subr.mxu0 0.0
        %937 = vmatpush1.msra.mxu0 0.0
        %938 = vmatprep.subr.mxu0 0.0
        %939 = vmatpush1.msra.mxu0 0.0
        %940 = vmatprep.subr.mxu0 0.0
        %941 = vmatpush1.msra.mxu0 0.0
        %942 = vmatprep.subr.mxu0 0.0
        %943 = vmatpush1.msra.mxu0 0.0
        %944 = vmatprep.subr.mxu0 0.0
        %945 = vmatpush1.msra.mxu0 0.0
        %946 = vmatprep.subr.mxu0 0.0
        %947 = vmatpush1.msra.mxu0 0.0
        %948 = vmatprep.subr.mxu0 0.0
        %949 = vmatpush1.msra.mxu0 0.0
        %950 = vmatprep.subr.mxu0 0.0
        %951 = vmatpush1.msra.mxu0 0.0
        %952 = vmatprep.subr.mxu0 0.0
        %953 = vmatpush1.msra.mxu0 0.0
        %954 = vmatprep.subr.mxu0 0.0
        %955 = vmatpush1.msra.mxu0 0.0
        %956 = vmatprep.subr.mxu0 0.0
        %957 = vmatpush1.msra.mxu0 0.0
        %958 = vmatprep.subr.mxu0 0.0
        %959 = vmatpush1.msra.mxu0 0.0
        %960 = vmatprep.subr.mxu0 0.0
        %961 = vmatpush1.msra.mxu0 0.0
        %962 = vmatprep.subr.mxu0 0.0
        %963 = vmatpush1.msra.mxu0 0.0
        %964 = vmatprep.subr.mxu0 0.0
        %965 = vmatpush1.msra.mxu0 0.0
        %966 = vmatprep.mubr.f32.mxu0 0.0
        %967 = vmatmul.mubr.f32.gmra.mrb[0].mxu0 %v900
        %v968 = vpop.f32.mrb[0].mxu0
        %v969 = vadd.f32 0.0, %v968
        %v970 = vpop.f32.mrb[0].mxu0
        %v971 = vadd.f32 0.0, %v970
        %972 = vdwg.mxu0
        %v974 = vlaneseq
        %v975 = vshrl.u32 %v974, 7
        %v976 = vsub.s32 0, %v975
        %v977 = vrot.slane %v254, %v976
        %v978 = vlaneseq
        %v979 = vshrl.u32 %v978, 7
        %v980 = vsub.s32 4, %v979
        %v981 = vrot.slane %v254, %v980
        %v984 = vlaneseq
        %v985 = vshrl.u32 %v984, 7
        %v986 = vsub.s32 0, %v985
        %v987 = vrot.slane %v977, %v986
        %v988 = vlaneseq
        %v989 = vshrl.u32 %v988, 7
        %v990 = vsub.s32 0, %v989
        %v991 = vrot.slane %v981, %v990
        %994 = vrot.lane.b32.xlu0 %v987, 1
        %v995 = vpop.permute.xlu0 %994
        %996 = vrot.lane.b32.xlu0 %v991, 1
        %v997 = vpop.permute.xlu0 %996
        %v998 = vsel %vm359, %v995, %v997
        %v1002 = vadd.f32 %v969, %v995
        %v1003 = vadd.f32 %v971, %v998
        %v1004 = vadd.f32 %v969, %v997
        %1008 = vrot.lane.b32.xlu0 %v1002, 127
        %v1009 = vpop.permute.xlu0 %1008
        %1010 = vrot.lane.b32.xlu0 %v1003, 127
        %v1011 = vpop.permute.xlu0 %1010
        %1012 = vrot.lane.b32.xlu0 %v1004, 127
        %v1013 = vpop.permute.xlu0 %1012
        %v1014 = vsel %vm337, %v1009, %v1011
        %v1015 = vsel %vm337, %v1011, %v1013
        %v1018 = vmax.f32 %v969, %v1014
        %v1019 = vmax.f32 %v971, %v1015
        %v1020 = vlaneseq
        %v1021 = vshrl.u32 %v1020, 7
        %v1022 = vsub.s32 1, %v1021
        %v1023 = vrot.slane %v254, %v1022
        %v1024 = vlaneseq
        %v1025 = vshrl.u32 %v1024, 7
        %v1026 = vsub.s32 5, %v1025
        %v1027 = vrot.slane %v254, %v1026
        %v1030 = vlaneseq
        %v1031 = vshrl.u32 %v1030, 7
        %v1032 = vsub.s32 1, %v1031
        %v1033 = vrot.slane %v1023, %v1032
        %v1034 = vlaneseq
        %v1035 = vshrl.u32 %v1034, 7
        %v1036 = vsub.s32 1, %v1035
        %v1037 = vrot.slane %v1027, %v1036
        %1040 = vrot.lane.b32.xlu0 %v1033, 2
        %v1041 = vpop.permute.xlu0 %1040
        %1042 = vrot.lane.b32.xlu0 %v1037, 2
        %v1043 = vpop.permute.xlu0 %1042
        %vm1044 = vcmask 15360
        %v1045 = vsel %vm1044, %v1041, %v1043
        %v1049 = vadd.f32 %v969, %v1041
        %v1050 = vadd.f32 %v971, %v1045
        %v1051 = vadd.f32 %v969, %v1043
        %1055 = vrot.lane.b32.xlu0 %v1049, 126
        %v1056 = vpop.permute.xlu0 %1055
        %1057 = vrot.lane.b32.xlu0 %v1050, 126
        %v1058 = vpop.permute.xlu0 %1057
        %1059 = vrot.lane.b32.xlu0 %v1051, 126
        %v1060 = vpop.permute.xlu0 %1059
        %v1061 = vsel %vm453, %v1056, %v1058
        %v1062 = vsel %vm453, %v1058, %v1060
        %v1065 = vmax.f32 %v1018, %v1061
        %v1066 = vmax.f32 %v1019, %v1062
        %v1067 = vlaneseq
        %v1068 = vshrl.u32 %v1067, 7
        %v1069 = vsub.s32 2, %v1068
        %v1070 = vrot.slane %v254, %v1069
        %v1071 = vlaneseq
        %v1072 = vshrl.u32 %v1071, 7
        %v1073 = vsub.s32 6, %v1072
        %v1074 = vrot.slane %v254, %v1073
        %v1077 = vlaneseq
        %v1078 = vshrl.u32 %v1077, 7
        %v1079 = vsub.s32 2, %v1078
        %v1080 = vrot.slane %v1070, %v1079
        %v1081 = vlaneseq
        %v1082 = vshrl.u32 %v1081, 7
        %v1083 = vsub.s32 2, %v1082
        %v1084 = vrot.slane %v1074, %v1083
        %1087 = vrot.lane.b32.xlu0 %v1080, 16
        %v1088 = vpop.permute.xlu0 %1087
        %1089 = vrot.lane.b32.xlu0 %v1084, 16
        %v1090 = vpop.permute.xlu0 %1089
        %v1091 = vsel %vm403, %v1088, %v1090
        %v1095 = vadd.f32 %v1065, %v1088
        %v1096 = vadd.f32 %v1066, %v1091
        %v1097 = vadd.f32 %v1065, %v1090
        %1101 = vrot.lane.b32.xlu0 %v1095, 112
        %v1102 = vpop.permute.xlu0 %1101
        %1103 = vrot.lane.b32.xlu0 %v1096, 112
        %v1104 = vpop.permute.xlu0 %1103
        %1105 = vrot.lane.b32.xlu0 %v1097, 112
        %v1106 = vpop.permute.xlu0 %1105
        %v1107 = vsel %vm293, %v1102, %v1104
        %v1108 = vsel %vm293, %v1104, %v1106
        %v1111 = vmax.f32 %v1065, %v1107
        %v1112 = vmax.f32 %v1066, %v1108
        %v1113 = vlaneseq
        %v1114 = vshrl.u32 %v1113, 7
        %v1115 = vsub.s32 3, %v1114
        %v1116 = vrot.slane %v254, %v1115
        %v1117 = vlaneseq
        %v1118 = vshrl.u32 %v1117, 7
        %v1119 = vsub.s32 7, %v1118
        %v1120 = vrot.slane %v254, %v1119
        %v1123 = vlaneseq
        %v1124 = vshrl.u32 %v1123, 7
        %v1125 = vsub.s32 3, %v1124
        %v1126 = vrot.slane %v1116, %v1125
        %v1127 = vlaneseq
        %v1128 = vshrl.u32 %v1127, 7
        %v1129 = vsub.s32 3, %v1128
        %v1130 = vrot.slane %v1120, %v1129
        %1133 = vrot.lane.b32.xlu0 %v1126, 32
        %v1134 = vpop.permute.xlu0 %1133
        %1135 = vrot.lane.b32.xlu0 %v1130, 32
        %v1136 = vpop.permute.xlu0 %1135
        %vm1137 = vcmask 261120
        %v1138 = vsel %vm1137, %v1134, %v1136
        %v1142 = vadd.f32 %v1065, %v1134
        %v1143 = vadd.f32 %v1066, %v1138
        %v1144 = vadd.f32 %v1065, %v1136
        %1148 = vrot.lane.b32.xlu0 %v1142, 96
        %v1149 = vpop.permute.xlu0 %1148
        %1150 = vrot.lane.b32.xlu0 %v1143, 96
        %v1151 = vpop.permute.xlu0 %1150
        %1152 = vrot.lane.b32.xlu0 %v1144, 96
        %v1153 = vpop.permute.xlu0 %1152
        %v1154 = vsel %vm495, %v1149, %v1151
        %v1155 = vsel %vm495, %v1151, %v1153
        %v1158 = vmax.f32 %v1111, %v1154
        %v1159 = vmax.f32 %v1112, %v1155
        %v1160 = vld [vmem:[%s5] sm:$0xff]
        %v1161 = vld [vmem:[%s5 + $0x8] sm:$0xff]
        %v1162 = vld [vmem:[%s5 + $0x10] sm:$0xff]
        %v1163 = vld [vmem:[%s5 + $0x18] sm:$0xff]
        %v1164 = vld [vmem:[%s5 + $0x20] sm:$0xff]
        %v1165 = vld [vmem:[%s5 + $0x28] sm:$0xff]
        %v1166 = vld [vmem:[%s5 + $0x30] sm:$0xff]
        %v1167 = vld [vmem:[%s5 + $0x38] sm:$0xff]
        %v1168 = vld [vmem:[%s5 + $0x40] sm:$0xff]
        %v1169 = vld [vmem:[%s5 + $0x48] sm:$0xff]
        %v1170 = vld [vmem:[%s5 + $0x50] sm:$0xff]
        %v1171 = vld [vmem:[%s5 + $0x58] sm:$0xff]
        %v1172 = vld [vmem:[%s5 + $0x60] sm:$0xff]
        %v1173 = vld [vmem:[%s5 + $0x68] sm:$0xff]
        %v1174 = vld [vmem:[%s5 + $0x70] sm:$0xff]
        %v1175 = vld [vmem:[%s5 + $0x78] sm:$0xff]
        %v1176 = vld [vmem:[%s5 + $0x80] sm:$0xff]
        %v1177 = vld [vmem:[%s5 + $0x88] sm:$0xff]
        %v1178 = vld [vmem:[%s5 + $0x90] sm:$0xff]
        %v1179 = vld [vmem:[%s5 + $0x98] sm:$0xff]
        %v1180 = vld [vmem:[%s5 + $0xa0] sm:$0xff]
        %v1181 = vld [vmem:[%s5 + $0xa8] sm:$0xff]
        %v1182 = vld [vmem:[%s5 + $0xb0] sm:$0xff]
        %v1183 = vld [vmem:[%s5 + $0xb8] sm:$0xff]
        %v1184 = vld [vmem:[%s5 + $0xc0] sm:$0xff]
        %v1185 = vld [vmem:[%s5 + $0xc8] sm:$0xff]
        %v1186 = vld [vmem:[%s5 + $0xd0] sm:$0xff]
        %v1187 = vld [vmem:[%s5 + $0xd8] sm:$0xff]
        %v1188 = vld [vmem:[%s5 + $0xe0] sm:$0xff]
        %v1189 = vld [vmem:[%s5 + $0xe8] sm:$0xff]
        %v1190 = vld [vmem:[%s5 + $0xf0] sm:$0xff]
        %v1191 = vld [vmem:[%s5 + $0xf8] sm:$0xff]
        %1192 = vmatprep.subr.mxu0 0.0
        %1193 = vmatpush1.msra.mxu0 %v1160
        %1194 = vmatprep.subr.mxu0 0.0
        %1195 = vmatpush1.msra.mxu0 %v1161
        %1196 = vmatprep.subr.mxu0 0.0
        %1197 = vmatpush1.msra.mxu0 %v1162
        %1198 = vmatprep.subr.mxu0 0.0
        %1199 = vmatpush1.msra.mxu0 %v1163
        %1200 = vmatprep.subr.mxu0 0.0
        %1201 = vmatpush1.msra.mxu0 %v1164
        %1202 = vmatprep.subr.mxu0 0.0
        %1203 = vmatpush1.msra.mxu0 %v1165
        %1204 = vmatprep.subr.mxu0 0.0
        %1205 = vmatpush1.msra.mxu0 %v1166
        %1206 = vmatprep.subr.mxu0 0.0
        %1207 = vmatpush1.msra.mxu0 %v1167
        %1208 = vmatprep.subr.mxu0 0.0
        %1209 = vmatpush1.msra.mxu0 %v1168
        %1210 = vmatprep.subr.mxu0 0.0
        %1211 = vmatpush1.msra.mxu0 %v1169
        %1212 = vmatprep.subr.mxu0 0.0
        %1213 = vmatpush1.msra.mxu0 %v1170
        %1214 = vmatprep.subr.mxu0 0.0
        %1215 = vmatpush1.msra.mxu0 %v1171
        %1216 = vmatprep.subr.mxu0 0.0
        %1217 = vmatpush1.msra.mxu0 %v1172
        %1218 = vmatprep.subr.mxu0 0.0
        %1219 = vmatpush1.msra.mxu0 %v1173
        %1220 = vmatprep.subr.mxu0 0.0
        %1221 = vmatpush1.msra.mxu0 %v1174
        %1222 = vmatprep.subr.mxu0 0.0
        %1223 = vmatpush1.msra.mxu0 %v1175
        %1224 = vmatprep.subr.mxu0 0.0
        %1225 = vmatpush1.msra.mxu0 %v1176
        %1226 = vmatprep.subr.mxu0 0.0
        %1227 = vmatpush1.msra.mxu0 %v1177
        %1228 = vmatprep.subr.mxu0 0.0
        %1229 = vmatpush1.msra.mxu0 %v1178
        %1230 = vmatprep.subr.mxu0 0.0
        %1231 = vmatpush1.msra.mxu0 %v1179
        %1232 = vmatprep.subr.mxu0 0.0
        %1233 = vmatpush1.msra.mxu0 %v1180
        %1234 = vmatprep.subr.mxu0 0.0
        %1235 = vmatpush1.msra.mxu0 %v1181
        %1236 = vmatprep.subr.mxu0 0.0
        %1237 = vmatpush1.msra.mxu0 %v1182
        %1238 = vmatprep.subr.mxu0 0.0
        %1239 = vmatpush1.msra.mxu0 %v1183
        %1240 = vmatprep.subr.mxu0 0.0
        %1241 = vmatpush1.msra.mxu0 %v1184
        %1242 = vmatprep.subr.mxu0 0.0
        %1243 = vmatpush1.msra.mxu0 %v1185
        %1244 = vmatprep.subr.mxu0 0.0
        %1245 = vmatpush1.msra.mxu0 %v1186
        %1246 = vmatprep.subr.mxu0 0.0
        %1247 = vmatpush1.msra.mxu0 %v1187
        %1248 = vmatprep.subr.mxu0 0.0
        %1249 = vmatpush1.msra.mxu0 %v1188
        %1250 = vmatprep.subr.mxu0 0.0
        %1251 = vmatpush1.msra.mxu0 %v1189
        %1252 = vmatprep.subr.mxu0 0.0
        %1253 = vmatpush1.msra.mxu0 %v1190
        %1254 = vmatprep.subr.mxu0 0.0
        %1255 = vmatpush1.msra.mxu0 %v1191
        %1256 = vmatprep.mubr.f32.mxu0 %v1159
        %1257 = vmatmul.mubr.f32.gmra.mrb[0].mxu0 %v1158
        %v1258 = vpop.f32.mrb[0].mxu0
        %v1259 = vadd.f32 0.0, %v1258
        %v1260 = vpop.f32.mrb[0].mxu0
        %1261 = vdwg.mxu0
        %vm1262 = vcmask 293888
        %1263 = vst.msk [vmem:[%s244] sm:$0xff] %vm1262, %v1259
        %s1264 = sand.u32 %s159, 1
        %s1265 = scalar_lea.sflag [#allocation3], %s1264
        %s1266 = sand.u32 %s159, 1
        %s1267 = smul.addr %s1266, 8
        %s1268 = scalar_lea.vmem [#allocation2], %s1267
        // Predicated region
        $region45: #{tpu_custom_call.1} parent=43 // pred_check
          %p1269 = pneg %p169
        $region46: #{tpu_custom_call.1} parent=43 // pred_check_branch
          %1271 = sbr.rel (%p1269) target = $region48
        $region47: #{tpu_custom_call.1} parent=43 // pred_region
          %s1273 = ssub.s32 128, 128
          %1274 = vsyncadd %s1265, %s1273
          %s1275 = smul.addr %s20, 128
          %s1276 = scalar_lea.hbm %s6, %s1275
          %s1278 = sshll.u32 %s1268, 4
          %s1279 = int_to_ptr.vmem [resolvable:$true] %s1278
          %1281 = dma.vmem_to_hbm [thread:$0]  %s1279, 128, %s1276, %s1265
        $region48: #{tpu_custom_call.1} parent=43 // pred_fallthru
          _
      $region44: #{tpu_custom_call.1} parent=5 // pred_fallthru
        _
      %p1282 = scmp.le.s32.totalorder 2, %s15
      // Predicated region
      $region49: #{tpu_custom_call.1} parent=5 // pred_check
        %p1283 = pneg %p1282
      $region50: #{tpu_custom_call.1} parent=5 // pred_check_branch
        %1285 = sbr.rel (%p1283) target = $region52
      $region51: #{tpu_custom_call.1} parent=5 // pred_region
        %s1286 = ssub.s32 %s15, 2
        // Predicated region
        $region53: #{tpu_custom_call.1} parent=51 // pred_check
          %p1287 = pneg %p175
        $region54: #{tpu_custom_call.1} parent=51 // pred_check_branch
          %1289 = sbr.rel (%p1287) target = $region56
        $region55: #{tpu_custom_call.1} parent=51 // pred_region
          %s1290 = sand.u32 %s160, 1
          %s1291 = scalar_lea.sflag [#allocation3], %s1290
          %s1292 = sand.u32 %s160, 1
          %s1293 = smul.addr %s1292, 8
          %s1294 = scalar_lea.vmem [#allocation2], %s1293
          %1295 = dma.done %s1291, 128
        $region56: #{tpu_custom_call.1} parent=51 // pred_fallthru
          _
      $region52: #{tpu_custom_call.1} parent=5 // pred_fallthru
        _
    $region6: #{tpu_custom_call.1} parent=1 // loop_footer
      %s19 = sadd.s32 1, %s15
    $region7: #{tpu_custom_call.1} parent=1 // loop_footer_branch
      %14 = sbr.rel target = $region3
    $region8: #{tpu_custom_call.1} parent=1 // loop_exit
      _
    %1296 = vsyncpa [#allocation3], 1
    %s1297 = scalar_lea.sflag [#allocation3], 1
    %1298 = vsyncpa %s1297, 1

</llo_original>
